<compile_context>
chip_gen: v7x
topology: tpu7x:2x2x1
jax: 0.10.0
libtpu: 0.0.40
codegen_flags: <defaults>
</compile_context>

<pallas_src>
import functools

import jax
import jax.numpy as jnp
from jax.experimental import pallas as pl
from jax.experimental.pallas import tpu as pltpu


NEG_SLOPE = 0.01  # PyTorch nn.LeakyReLU() default


def _leaky_relu(x):
    return jnp.where(x > 0, x, NEG_SLOPE * x)


def _round_up(n, m):
    return ((n + m - 1) // m) * m


def _mlp_kernel(xt_ref,            # (d_in, tm)   batch on lanes
                w1_ref, b1_ref,    # (64, d_in), (64, 1)
                w2_ref, b2_ref,    # (32, 64),   (32, 1)
                w3_ref, b3_ref,    # (32, 32),   (32, 1)
                w4_ref, b4_ref,    # (32, 1),    (1, 1)
                o_ref,             # (1, tm)     lane-dense output row
                *, mxu_dtype):
    xt = xt_ref[...]               # f32 (d_in, tm)
    w1 = w1_ref[...]               # f32 (64, d_in)
    d_in = xt.shape[0]

    # ---- Layer 1 on the VPU: K = d_in is tiny, the MXU would zero-pad the
    # contraction to 128/256.  d_in broadcast multiply-adds instead.
    h = b1_ref[...] + w1[:, 0:1] * xt[0:1, :]          # (64, tm)
    for k in range(1, d_in):
        h = h + w1[:, k:k+1] * xt[k:k+1, :]
    h = _leaky_relu(h)

    # ---- Layers 2 & 3 on the MXU; lane-dense (32, tm) results, f32 accum.
    h = jnp.dot(w2_ref[...].astype(mxu_dtype), h.astype(mxu_dtype),
                preferred_element_type=jnp.float32) + b2_ref[...]
    h = _leaky_relu(h)

    h = jnp.dot(w3_ref[...].astype(mxu_dtype), h.astype(mxu_dtype),
                preferred_element_type=jnp.float32) + b3_ref[...]
    h = _leaky_relu(h)

    # ---- Layer 4 (N = 1) on VPU + XLU sublane reduce -> (1, tm) row,
    # which lands directly in the lane-dense output block.
    out = jnp.sum(h * w4_ref[...], axis=0, keepdims=True) + b4_ref[...]
    o_ref[...] = out.astype(o_ref.dtype)


@functools.partial(jax.jit, static_argnames=("tm", "use_bf16_mxu"))
def target_value_nn(x, params, *, tm=1024, use_bf16_mxu=False):
    """Forward pass of TargetValueNN.

    x: (B, d_in) float32.
    params: PyTorch-layout weights: w{i} of shape (out, in), b{i} of shape (out,).
    Returns (B, 1) float32.
    """
    B, d_in = x.shape

    w1 = params["w1"]; b1 = params["b1"].reshape(-1, 1)
    w2 = params["w2"]; b2 = params["b2"].reshape(-1, 1)
    w3 = params["w3"]; b3 = params["b3"].reshape(-1, 1)
    w4 = params["w4"].reshape(-1, 1)          # (32, 1)
    b4 = params["b4"].reshape(1, 1)           # (1, 1)

    # Batch tile: multiple of 128 lanes, as large as practical, clamped to B.
    tm = max(128, (int(tm) // 128) * 128)
    b_pad = _round_up(B, 128)
    tm = min(tm, b_pad)
    b_pad = _round_up(B, tm)

    xt = x.T                                   # (d_in, B): batch on lanes
    if b_pad != B:
        xt = jnp.pad(xt, ((0, 0), (0, b_pad - B)))

    mxu_dtype = jnp.bfloat16 if use_bf16_mxu else jnp.float32
    kernel = functools.partial(_mlp_kernel, mxu_dtype=mxu_dtype)

    def full_spec(a):
        return pl.BlockSpec(a.shape, lambda i: (0, 0))

    grid_spec = pltpu.PrefetchScalarGridSpec(
        num_scalar_prefetch=0,
        grid=(b_pad // tm,),
        in_specs=[
            pl.BlockSpec((d_in, tm), lambda i: (0, i)),   # x tile (batch on lanes)
            full_spec(w1), full_spec(b1),
            full_spec(w2), full_spec(b2),
            full_spec(w3), full_spec(b3),
            full_spec(w4), full_spec(b4),
        ],
        out_specs=pl.BlockSpec((1, tm), lambda i: (0, i)),  # lane-dense output
    )

    out_row = pl.pallas_call(
        kernel,
        out_shape=jax.ShapeDtypeStruct((1, b_pad), jnp.float32),
        grid_spec=grid_spec,
        compiler_params=pltpu.CompilerParams(
            dimension_semantics=("parallel",),
            vmem_limit_bytes=32 * 1024 * 1024,
        ),
    )(xt, w1, b1, w2, b2, w3, b3, w4, b4)

    return out_row.reshape(b_pad, 1)[:B]


def init_params(key, d_in):
    """PyTorch nn.Linear default init: weight (out, in) and bias (out,), both
    ~ U(-1/sqrt(fan_in), 1/sqrt(fan_in))."""
    dims = [(d_in, 64), (64, 32), (32, 32), (32, 1)]
    params = {}
    for idx, (fan_in, fan_out) in enumerate(dims, start=1):
        key, kw, kb = jax.random.split(key, 3)
        bound = 1.0 / jnp.sqrt(jnp.float32(fan_in))
        params[f"w{idx}"] = jax.random.uniform(
            kw, (fan_out, fan_in), jnp.float32, -bound, bound)
        params[f"b{idx}"] = jax.random.uniform(
            kb, (fan_out,), jnp.float32, -bound, bound)
    return params


def reference_forward(x, params):
    h = x
    for i in (1, 2, 3):
        h = h @ params[f"w{i}"].T + params[f"b{i}"]
        h = jnp.where(h > 0, h, NEG_SLOPE * h)
    return h @ params["w4"].T + params["b4"]


if __name__ == "__main__":
    key = jax.random.PRNGKey(0)
    k_x, k_p = jax.random.split(key)

    B, d_in = 256, 4           # small synthetic problem; d_in = state dimension
    x = jax.random.normal(k_x, (B, d_in), jnp.float32)
    params = init_params(k_p, d_in)

    ref = reference_forward(x, params)

    # f32 path (exact semantics of the PyTorch module).
    out = jax.block_until_ready(target_value_nn(x, params))
    assert out.shape == (B, 1)
    assert jnp.allclose(out, ref, atol=1e-5, rtol=1e-5), (
        float(jnp.max(jnp.abs(out - ref))))

    # bf16-MXU path (fast path on v6e/v7x), f32 accumulation — looser tolerance.
    out_bf16 = jax.block_until_ready(target_value_nn(x, params, use_bf16_mxu=True))
    assert out_bf16.shape == (B, 1)
    assert jnp.allclose(out_bf16, ref, atol=5e-2, rtol=5e-2), (
        float(jnp.max(jnp.abs(out_bf16 - ref))))

    print("KERNEL_OK")
</pallas_src>

<mosaic_0001>
module attributes {stable_mosaic.version = 11 : i64} {
  func.func @_mlp_kernel(%arg0: i32, %arg1: memref<4x256xf32, #tpu.memory_space<vmem>>, %arg2: memref<64x4xf32, #tpu.memory_space<vmem>>, %arg3: memref<64x1xf32, #tpu.memory_space<vmem>>, %arg4: memref<32x64xf32, #tpu.memory_space<vmem>>, %arg5: memref<32x1xf32, #tpu.memory_space<vmem>>, %arg6: memref<32x32xf32, #tpu.memory_space<vmem>>, %arg7: memref<32x1xf32, #tpu.memory_space<vmem>>, %arg8: memref<32x1xf32, #tpu.memory_space<vmem>>, %arg9: memref<1x1xf32, #tpu.memory_space<vmem>>, %arg10: memref<1x256xf32, #tpu.memory_space<vmem>>) attributes {dimension_semantics = [#tpu.dimension_semantics<parallel>], iteration_bounds = array<i64: 1>, scalar_prefetch = 0 : i64, scratch_operands = 0 : i64, tpu.core_type = #tpu.core_type<tc>, window_params = [{transform_indices = @transform_0, window_bounds = array<i64: 4, 256>}, {pipeline_mode = #tpu.pipeline_mode<synchronous>, transform_indices = @transform_1, window_bounds = array<i64: 64, 4>}, {pipeline_mode = #tpu.pipeline_mode<synchronous>, transform_indices = @transform_2, window_bounds = array<i64: 64, 1>}, {pipeline_mode = #tpu.pipeline_mode<synchronous>, transform_indices = @transform_3, window_bounds = array<i64: 32, 64>}, {pipeline_mode = #tpu.pipeline_mode<synchronous>, transform_indices = @transform_4, window_bounds = array<i64: 32, 1>}, {pipeline_mode = #tpu.pipeline_mode<synchronous>, transform_indices = @transform_5, window_bounds = array<i64: 32, 32>}, {pipeline_mode = #tpu.pipeline_mode<synchronous>, transform_indices = @transform_6, window_bounds = array<i64: 32, 1>}, {pipeline_mode = #tpu.pipeline_mode<synchronous>, transform_indices = @transform_7, window_bounds = array<i64: 32, 1>}, {pipeline_mode = #tpu.pipeline_mode<synchronous>, transform_indices = @transform_8, window_bounds = array<i64: 1, 1>}, {transform_indices = @transform_9, window_bounds = array<i64: 1, 256>}]} {
    %c0 = arith.constant 0 : index
    %c0_0 = arith.constant 0 : index
    %0 = vector.load %arg1[%c0, %c0_0] : memref<4x256xf32, #tpu.memory_space<vmem>>, vector<4x256xf32>
    %c0_1 = arith.constant 0 : index
    %c0_2 = arith.constant 0 : index
    %1 = vector.load %arg2[%c0_1, %c0_2] : memref<64x4xf32, #tpu.memory_space<vmem>>, vector<64x4xf32>
    %c0_3 = arith.constant 0 : index
    %c0_4 = arith.constant 0 : index
    %2 = vector.load %arg3[%c0_3, %c0_4] : memref<64x1xf32, #tpu.memory_space<vmem>>, vector<64x1xf32>
    %3 = vector.extract_strided_slice %1 {offsets = [0, 0], sizes = [64, 1], strides = [1, 1]} : vector<64x4xf32> to vector<64x1xf32>
    %4 = vector.extract_strided_slice %0 {offsets = [0, 0], sizes = [1, 256], strides = [1, 1]} : vector<4x256xf32> to vector<1x256xf32>
    %5 = vector.broadcast %3 : vector<64x1xf32> to vector<64x256xf32>
    %6 = vector.broadcast %4 : vector<1x256xf32> to vector<64x256xf32>
    %7 = arith.mulf %5, %6 : vector<64x256xf32>
    %8 = vector.broadcast %2 : vector<64x1xf32> to vector<64x256xf32>
    %9 = arith.addf %8, %7 : vector<64x256xf32>
    %10 = vector.extract_strided_slice %1 {offsets = [0, 1], sizes = [64, 1], strides = [1, 1]} : vector<64x4xf32> to vector<64x1xf32>
    %11 = vector.extract_strided_slice %0 {offsets = [1, 0], sizes = [1, 256], strides = [1, 1]} : vector<4x256xf32> to vector<1x256xf32>
    %12 = vector.broadcast %10 : vector<64x1xf32> to vector<64x256xf32>
    %13 = vector.broadcast %11 : vector<1x256xf32> to vector<64x256xf32>
    %14 = arith.mulf %12, %13 : vector<64x256xf32>
    %15 = arith.addf %9, %14 : vector<64x256xf32>
    %16 = vector.extract_strided_slice %1 {offsets = [0, 2], sizes = [64, 1], strides = [1, 1]} : vector<64x4xf32> to vector<64x1xf32>
    %17 = vector.extract_strided_slice %0 {offsets = [2, 0], sizes = [1, 256], strides = [1, 1]} : vector<4x256xf32> to vector<1x256xf32>
    %18 = vector.broadcast %16 : vector<64x1xf32> to vector<64x256xf32>
    %19 = vector.broadcast %17 : vector<1x256xf32> to vector<64x256xf32>
    %20 = arith.mulf %18, %19 : vector<64x256xf32>
    %21 = arith.addf %15, %20 : vector<64x256xf32>
    %22 = vector.extract_strided_slice %1 {offsets = [0, 3], sizes = [64, 1], strides = [1, 1]} : vector<64x4xf32> to vector<64x1xf32>
    %23 = vector.extract_strided_slice %0 {offsets = [3, 0], sizes = [1, 256], strides = [1, 1]} : vector<4x256xf32> to vector<1x256xf32>
    %24 = vector.broadcast %22 : vector<64x1xf32> to vector<64x256xf32>
    %25 = vector.broadcast %23 : vector<1x256xf32> to vector<64x256xf32>
    %26 = arith.mulf %24, %25 : vector<64x256xf32>
    %27 = arith.addf %21, %26 : vector<64x256xf32>
    %cst = arith.constant 0.000000e+00 : f32
    %28 = vector.broadcast %cst : f32 to vector<64x256xf32>
    %29 = arith.cmpf ogt, %27, %28 : vector<64x256xf32>
    %cst_5 = arith.constant 0.00999999977 : f32
    %30 = vector.broadcast %cst_5 : f32 to vector<64x256xf32>
    %31 = arith.mulf %30, %27 : vector<64x256xf32>
    %32 = arith.select %29, %27, %31 : vector<64x256xi1>, vector<64x256xf32>
    %c0_6 = arith.constant 0 : index
    %c0_7 = arith.constant 0 : index
    %33 = vector.load %arg4[%c0_6, %c0_7] : memref<32x64xf32, #tpu.memory_space<vmem>>, vector<32x64xf32>
    %cst_8 = arith.constant dense<0.000000e+00> : vector<32x256xf32>
    %34 = tpu.matmul %33, %32, %cst_8 {dimension_numbers = #tpu.dot_dimension_numbers<[1], [0], [0], [1], [0, 0, 1, 1], [], []>} : vector<32x64xf32>, vector<64x256xf32>, vector<32x256xf32> -> vector<32x256xf32>
    %c0_9 = arith.constant 0 : index
    %c0_10 = arith.constant 0 : index
    %35 = vector.load %arg5[%c0_9, %c0_10] : memref<32x1xf32, #tpu.memory_space<vmem>>, vector<32x1xf32>
    %36 = vector.broadcast %35 : vector<32x1xf32> to vector<32x256xf32>
    %37 = arith.addf %34, %36 : vector<32x256xf32>
    %cst_11 = arith.constant 0.000000e+00 : f32
    %38 = vector.broadcast %cst_11 : f32 to vector<32x256xf32>
    %39 = arith.cmpf ogt, %37, %38 : vector<32x256xf32>
    %cst_12 = arith.constant 0.00999999977 : f32
    %40 = vector.broadcast %cst_12 : f32 to vector<32x256xf32>
    %41 = arith.mulf %40, %37 : vector<32x256xf32>
    %42 = arith.select %39, %37, %41 : vector<32x256xi1>, vector<32x256xf32>
    %c0_13 = arith.constant 0 : index
    %c0_14 = arith.constant 0 : index
    %43 = vector.load %arg6[%c0_13, %c0_14] : memref<32x32xf32, #tpu.memory_space<vmem>>, vector<32x32xf32>
    %cst_15 = arith.constant dense<0.000000e+00> : vector<32x256xf32>
    %44 = tpu.matmul %43, %42, %cst_15 {dimension_numbers = #tpu.dot_dimension_numbers<[1], [0], [0], [1], [0, 0, 1, 1], [], []>} : vector<32x32xf32>, vector<32x256xf32>, vector<32x256xf32> -> vector<32x256xf32>
    %c0_16 = arith.constant 0 : index
    %c0_17 = arith.constant 0 : index
    %45 = vector.load %arg7[%c0_16, %c0_17] : memref<32x1xf32, #tpu.memory_space<vmem>>, vector<32x1xf32>
    %46 = vector.broadcast %45 : vector<32x1xf32> to vector<32x256xf32>
    %47 = arith.addf %44, %46 : vector<32x256xf32>
    %cst_18 = arith.constant 0.000000e+00 : f32
    %48 = vector.broadcast %cst_18 : f32 to vector<32x256xf32>
    %49 = arith.cmpf ogt, %47, %48 : vector<32x256xf32>
    %cst_19 = arith.constant 0.00999999977 : f32
    %50 = vector.broadcast %cst_19 : f32 to vector<32x256xf32>
    %51 = arith.mulf %50, %47 : vector<32x256xf32>
    %52 = arith.select %49, %47, %51 : vector<32x256xi1>, vector<32x256xf32>
    %c0_20 = arith.constant 0 : index
    %c0_21 = arith.constant 0 : index
    %53 = vector.load %arg8[%c0_20, %c0_21] : memref<32x1xf32, #tpu.memory_space<vmem>>, vector<32x1xf32>
    %54 = vector.broadcast %53 : vector<32x1xf32> to vector<32x256xf32>
    %55 = arith.mulf %52, %54 : vector<32x256xf32>
    %cst_22 = arith.constant dense<0.000000e+00> : vector<256xf32>
    %56 = vector.multi_reduction <add>, %55, %cst_22 [0] : vector<32x256xf32> to vector<256xf32>
    %57 = vector.shape_cast %56 : vector<256xf32> to vector<1x256xf32>
    %c0_23 = arith.constant 0 : index
    %c0_24 = arith.constant 0 : index
    %58 = vector.load %arg9[%c0_23, %c0_24] : memref<1x1xf32, #tpu.memory_space<vmem>>, vector<1x1xf32>
    %59 = vector.broadcast %58 : vector<1x1xf32> to vector<1x256xf32>
    %60 = arith.addf %57, %59 : vector<1x256xf32>
    %c0_25 = arith.constant 0 : index
    %c0_26 = arith.constant 0 : index
    %61 = vector.load %arg10[%c0_25, %c0_26] : memref<1x256xf32, #tpu.memory_space<vmem>>, vector<1x256xf32>
    tpu.vector_store %arg10[%c0_25, %c0_26], %60 {strides = array<i32>} : memref<1x256xf32, #tpu.memory_space<vmem>>, vector<1x256xf32>,
    return
  }
  func.func @transform_0(%arg0: i32) -> (i32, i32) {
    %c0_i32 = arith.constant 0 : i32
    %c0_i32_0 = arith.constant 0 : i32
    return %c0_i32, %arg0 : i32, i32
  }
  func.func @transform_1(%arg0: i32) -> (i32, i32) {
    %c0_i32 = arith.constant 0 : i32
    %c0_i32_0 = arith.constant 0 : i32
    %c0_i32_1 = arith.constant 0 : i32
    return %c0_i32, %c0_i32_0 : i32, i32
  }
  func.func @transform_2(%arg0: i32) -> (i32, i32) {
    %c0_i32 = arith.constant 0 : i32
    %c0_i32_0 = arith.constant 0 : i32
    %c0_i32_1 = arith.constant 0 : i32
    return %c0_i32, %c0_i32_0 : i32, i32
  }
  func.func @transform_3(%arg0: i32) -> (i32, i32) {
    %c0_i32 = arith.constant 0 : i32
    %c0_i32_0 = arith.constant 0 : i32
    %c0_i32_1 = arith.constant 0 : i32
    return %c0_i32, %c0_i32_0 : i32, i32
  }
  func.func @transform_4(%arg0: i32) -> (i32, i32) {
    %c0_i32 = arith.constant 0 : i32
    %c0_i32_0 = arith.constant 0 : i32
    %c0_i32_1 = arith.constant 0 : i32
    return %c0_i32, %c0_i32_0 : i32, i32
  }
  func.func @transform_5(%arg0: i32) -> (i32, i32) {
    %c0_i32 = arith.constant 0 : i32
    %c0_i32_0 = arith.constant 0 : i32
    %c0_i32_1 = arith.constant 0 : i32
    return %c0_i32, %c0_i32_0 : i32, i32
  }
  func.func @transform_6(%arg0: i32) -> (i32, i32) {
    %c0_i32 = arith.constant 0 : i32
    %c0_i32_0 = arith.constant 0 : i32
    %c0_i32_1 = arith.constant 0 : i32
    return %c0_i32, %c0_i32_0 : i32, i32
  }
  func.func @transform_7(%arg0: i32) -> (i32, i32) {
    %c0_i32 = arith.constant 0 : i32
    %c0_i32_0 = arith.constant 0 : i32
    %c0_i32_1 = arith.constant 0 : i32
    return %c0_i32, %c0_i32_0 : i32, i32
  }
  func.func @transform_8(%arg0: i32) -> (i32, i32) {
    %c0_i32 = arith.constant 0 : i32
    %c0_i32_0 = arith.constant 0 : i32
    %c0_i32_1 = arith.constant 0 : i32
    return %c0_i32, %c0_i32_0 : i32, i32
  }
  func.func @transform_9(%arg0: i32) -> (i32, i32) {
    %c0_i32 = arith.constant 0 : i32
    %c0_i32_0 = arith.constant 0 : i32
    return %c0_i32, %arg0 : i32, i32
  }
}

</mosaic_0001>

<llo_original>
// kernel: target_value_nn.1
$region0: #{target_value_nn.1}
  #allocation0 [shape = 'u32[]', space=smem, size = 0x4, offset = 0x4, fixed_abs, tag = 'smem constant byte address 0x4 - core index']
  #allocation1 [shape = 'u32[144,128]{1,0:T(1,128)}', space=vmem, size = 0x12000, scoped, tag = 'internal scratch']
  #allocation2 [shape = 'f32[1,1]{1,0:T(1,128)S(1)}', space=vmem, size = 0x200, scoped, tag = 'scoped memory for target_value_nn.1']
  %s0 = inlined_call_operand.vmem [shape: f32[4,256], index: 0, kind: input, shape index: {}]
  %s1 = inlined_call_operand.vmem [shape: f32[64,4], index: 1, kind: input, shape index: {}]
  %s2 = inlined_call_operand.vmem [shape: f32[64,1], index: 2, kind: input, shape index: {}]
  %s3 = inlined_call_operand.vmem [shape: f32[32,64], index: 3, kind: input, shape index: {}]
  %s4 = inlined_call_operand.vmem [shape: f32[32,1], index: 4, kind: input, shape index: {}]
  %s5 = inlined_call_operand.vmem [shape: f32[32,32], index: 5, kind: input, shape index: {}]
  %s6 = inlined_call_operand.vmem [shape: f32[32,1], index: 6, kind: input, shape index: {}]
  %s7 = inlined_call_operand.vmem [shape: f32[32,1], index: 7, kind: input, shape index: {}]
  %s8 = inlined_call_operand.<no memory space> [shape: f32[1,1], index: 8, kind: input, shape index: {}]
  %s9 = inlined_call_operand.hbm [shape: f32[1,256], index: 9, kind: output, shape index: {}]
  %s10 = sld [smem:[#allocation0]]
  $region46: #{target_value_nn.1} parent=0
    _
  %s12 = ssub.s32 1, %s10
  %s13 = scalar_select 0, %s12, %s10
  %v14 = vstv %s8
  %15 = vst [vmem:[#allocation2] sm:$0x1] %v14
  $region1: #{target_value_nn.1} parent=0
    #allocation3 [shape = 'u8[1024]{0}', space=vmem, size = 0x400, scoped, tag = 'output window, operand 0, single buffered']
    #allocation4 [shape = 's32[1]{0}', space=sflag, size = 0x4, scoped, tag = 'scoped memory for target_value_nn.1']
    %16 = vsyncpa [#allocation4], 0
    // Predicated region
    $region2: #{target_value_nn.1} parent=1 // pred_check
      _
    $region3: #{target_value_nn.1} parent=1 // pred_check_branch
      %18 = sbr.rel (0) target = $region5
    $region4: #{target_value_nn.1} parent=1 // pred_region
      _
    $region5: #{target_value_nn.1} parent=1 // pred_fallthru
      _
    // Predicated region
    $region6: #{target_value_nn.1} parent=1 // pred_check
      _
    $region7: #{target_value_nn.1} parent=1 // pred_check_branch
      %20 = sbr.rel (0) target = $region9
    $region8: #{target_value_nn.1} parent=1 // pred_region
      _
    $region9: #{target_value_nn.1} parent=1 // pred_fallthru
      _
    // Predicated region
    $region10: #{target_value_nn.1} parent=1 // pred_check
      _
    $region11: #{target_value_nn.1} parent=1 // pred_check_branch
      %22 = sbr.rel (0) target = $region13
    $region12: #{target_value_nn.1} parent=1 // pred_region
      _
    $region13: #{target_value_nn.1} parent=1 // pred_fallthru
      _
    // Predicated region
    $region14: #{target_value_nn.1} parent=1 // pred_check
      _
    $region15: #{target_value_nn.1} parent=1 // pred_check_branch
      %24 = sbr.rel (0) target = $region17
    $region16: #{target_value_nn.1} parent=1 // pred_region
      _
    $region17: #{target_value_nn.1} parent=1 // pred_fallthru
      _
    // Predicated region
    $region18: #{target_value_nn.1} parent=1 // pred_check
      _
    $region19: #{target_value_nn.1} parent=1 // pred_check_branch
      %26 = sbr.rel (0) target = $region21
    $region20: #{target_value_nn.1} parent=1 // pred_region
      _
    $region21: #{target_value_nn.1} parent=1 // pred_fallthru
      _
    // Predicated region
    $region22: #{target_value_nn.1} parent=1 // pred_check
      _
    $region23: #{target_value_nn.1} parent=1 // pred_check_branch
      %28 = sbr.rel (0) target = $region25
    $region24: #{target_value_nn.1} parent=1 // pred_region
      _
    $region25: #{target_value_nn.1} parent=1 // pred_fallthru
      _
    // Predicated region
    $region26: #{target_value_nn.1} parent=1 // pred_check
      _
    $region27: #{target_value_nn.1} parent=1 // pred_check_branch
      %30 = sbr.rel (0) target = $region29
    $region28: #{target_value_nn.1} parent=1 // pred_region
      _
    $region29: #{target_value_nn.1} parent=1 // pred_fallthru
      _
    // Predicated region
    $region30: #{target_value_nn.1} parent=1 // pred_check
      _
    $region31: #{target_value_nn.1} parent=1 // pred_check_branch
      %32 = sbr.rel (0) target = $region33
    $region32: #{target_value_nn.1} parent=1 // pred_region
      _
    $region33: #{target_value_nn.1} parent=1 // pred_fallthru
      _
    // Predicated region
    $region34: #{target_value_nn.1} parent=1 // pred_check
      _
    $region35: #{target_value_nn.1} parent=1 // pred_check_branch
      %34 = sbr.rel (0) target = $region37
    $region36: #{target_value_nn.1} parent=1 // pred_region
      _
    $region37: #{target_value_nn.1} parent=1 // pred_fallthru
      _
    %v35 = vld [vmem:[%s0] sm:$0xff]
    %v36 = vld [vmem:[%s1] sm:$0xff]
    %v37 = vld [vmem:[%s1 + $0x8] sm:$0xff]
    %v38 = vld [vmem:[%s1 + $0x10] sm:$0xff]
    %v39 = vld [vmem:[%s1 + $0x18] sm:$0xff]
    %v40 = vld [vmem:[%s1 + $0x20] sm:$0xff]
    %v41 = vld [vmem:[%s1 + $0x28] sm:$0xff]
    %v42 = vld [vmem:[%s1 + $0x30] sm:$0xff]
    %v43 = vld [vmem:[%s1 + $0x38] sm:$0xff]
    %v44 = vld [vmem:[%s2] sm:$0xff]
    %v45 = vld [vmem:[%s2 + $0x8] sm:$0xff]
    %v46 = vld [vmem:[%s2 + $0x10] sm:$0xff]
    %v47 = vld [vmem:[%s2 + $0x18] sm:$0xff]
    %v48 = vld [vmem:[%s2 + $0x20] sm:$0xff]
    %v49 = vld [vmem:[%s2 + $0x28] sm:$0xff]
    %v50 = vld [vmem:[%s2 + $0x30] sm:$0xff]
    %v51 = vld [vmem:[%s2 + $0x38] sm:$0xff]
    %53 = vset.pattern.permute.xlu0 0
    %54 = vperm.xlu0 %53, %v36
    %v55 = vpop.permute.xlu0 %54
    %58 = vset.pattern.permute.xlu0 0
    %59 = vperm.xlu0 %58, %v37
    %v60 = vpop.permute.xlu0 %59
    %63 = vset.pattern.permute.xlu0 0
    %64 = vperm.xlu0 %63, %v38
    %v65 = vpop.permute.xlu0 %64
    %68 = vset.pattern.permute.xlu0 0
    %69 = vperm.xlu0 %68, %v39
    %v70 = vpop.permute.xlu0 %69
    %73 = vset.pattern.permute.xlu0 0
    %74 = vperm.xlu0 %73, %v40
    %v75 = vpop.permute.xlu0 %74
    %78 = vset.pattern.permute.xlu0 0
    %79 = vperm.xlu0 %78, %v41
    %v80 = vpop.permute.xlu0 %79
    %83 = vset.pattern.permute.xlu0 0
    %84 = vperm.xlu0 %83, %v42
    %v85 = vpop.permute.xlu0 %84
    %88 = vset.pattern.permute.xlu0 0
    %89 = vperm.xlu0 %88, %v43
    %v90 = vpop.permute.xlu0 %89
    %v93 = vlaneseq
    %v94 = vshrl.u32 %v93, 7
    %v95 = vsub.s32 0, %v94
    %v96 = vrot.slane %v35, %v95
    %v97 = vlaneseq
    %v98 = vshrl.u32 %v97, 7
    %v99 = vsub.s32 4, %v98
    %v100 = vrot.slane %v35, %v99
    %v103 = vlaneseq
    %v104 = vshrl.u32 %v103, 7
    %v105 = vsub.s32 0, %v104
    %v106 = vrot.slane %v96, %v105
    %v107 = vlaneseq
    %v108 = vshrl.u32 %v107, 7
    %v109 = vsub.s32 0, %v108
    %v110 = vrot.slane %v100, %v109
    %v111 = vmul.f32 %v55, %v106
    %v112 = vmul.f32 %v55, %v110
    %v113 = vmul.f32 %v60, %v106
    %v114 = vmul.f32 %v60, %v110
    %v115 = vmul.f32 %v65, %v106
    %v116 = vmul.f32 %v65, %v110
    %v117 = vmul.f32 %v70, %v106
    %v118 = vmul.f32 %v70, %v110
    %v119 = vmul.f32 %v75, %v106
    %v120 = vmul.f32 %v75, %v110
    %v121 = vmul.f32 %v80, %v106
    %v122 = vmul.f32 %v80, %v110
    %v123 = vmul.f32 %v85, %v106
    %v124 = vmul.f32 %v85, %v110
    %v125 = vmul.f32 %v90, %v106
    %v126 = vmul.f32 %v90, %v110
    %128 = vset.pattern.permute.xlu0 0
    %129 = vperm.xlu0 %128, %v44
    %v130 = vpop.permute.xlu0 %129
    %133 = vset.pattern.permute.xlu0 0
    %134 = vperm.xlu0 %133, %v45
    %v135 = vpop.permute.xlu0 %134
    %138 = vset.pattern.permute.xlu0 0
    %139 = vperm.xlu0 %138, %v46
    %v140 = vpop.permute.xlu0 %139
    %143 = vset.pattern.permute.xlu0 0
    %144 = vperm.xlu0 %143, %v47
    %v145 = vpop.permute.xlu0 %144
    %148 = vset.pattern.permute.xlu0 0
    %149 = vperm.xlu0 %148, %v48
    %v150 = vpop.permute.xlu0 %149
    %153 = vset.pattern.permute.xlu0 0
    %154 = vperm.xlu0 %153, %v49
    %v155 = vpop.permute.xlu0 %154
    %158 = vset.pattern.permute.xlu0 0
    %159 = vperm.xlu0 %158, %v50
    %v160 = vpop.permute.xlu0 %159
    %163 = vset.pattern.permute.xlu0 0
    %164 = vperm.xlu0 %163, %v51
    %v165 = vpop.permute.xlu0 %164
    %v167 = vadd.f32 %v130, %v111
    %v168 = vadd.f32 %v130, %v112
    %v169 = vadd.f32 %v135, %v113
    %v170 = vadd.f32 %v135, %v114
    %v171 = vadd.f32 %v140, %v115
    %v172 = vadd.f32 %v140, %v116
    %v173 = vadd.f32 %v145, %v117
    %v174 = vadd.f32 %v145, %v118
    %v175 = vadd.f32 %v150, %v119
    %v176 = vadd.f32 %v150, %v120
    %v177 = vadd.f32 %v155, %v121
    %v178 = vadd.f32 %v155, %v122
    %v179 = vadd.f32 %v160, %v123
    %v180 = vadd.f32 %v160, %v124
    %v181 = vadd.f32 %v165, %v125
    %v182 = vadd.f32 %v165, %v126
    %183 = vset.pattern.permute.xlu0 1
    %184 = vperm.xlu0 %183, %v36
    %v185 = vpop.permute.xlu0 %184
    %187 = vset.pattern.permute.xlu0 1
    %188 = vperm.xlu0 %187, %v37
    %v189 = vpop.permute.xlu0 %188
    %191 = vset.pattern.permute.xlu0 1
    %192 = vperm.xlu0 %191, %v38
    %v193 = vpop.permute.xlu0 %192
    %195 = vset.pattern.permute.xlu0 1
    %196 = vperm.xlu0 %195, %v39
    %v197 = vpop.permute.xlu0 %196
    %199 = vset.pattern.permute.xlu0 1
    %200 = vperm.xlu0 %199, %v40
    %v201 = vpop.permute.xlu0 %200
    %203 = vset.pattern.permute.xlu0 1
    %204 = vperm.xlu0 %203, %v41
    %v205 = vpop.permute.xlu0 %204
    %207 = vset.pattern.permute.xlu0 1
    %208 = vperm.xlu0 %207, %v42
    %v209 = vpop.permute.xlu0 %208
    %211 = vset.pattern.permute.xlu0 1
    %212 = vperm.xlu0 %211, %v43
    %v213 = vpop.permute.xlu0 %212
    %v215 = vlaneseq
    %v216 = vshrl.u32 %v215, 7
    %v217 = vsub.s32 1, %v216
    %v218 = vrot.slane %v35, %v217
    %v219 = vlaneseq
    %v220 = vshrl.u32 %v219, 7
    %v221 = vsub.s32 5, %v220
    %v222 = vrot.slane %v35, %v221
    %v225 = vlaneseq
    %v226 = vshrl.u32 %v225, 7
    %v227 = vsub.s32 1, %v226
    %v228 = vrot.slane %v218, %v227
    %v229 = vlaneseq
    %v230 = vshrl.u32 %v229, 7
    %v231 = vsub.s32 1, %v230
    %v232 = vrot.slane %v222, %v231
    %v233 = vmul.f32 %v185, %v228
    %v234 = vmul.f32 %v185, %v232
    %v235 = vmul.f32 %v189, %v228
    %v236 = vmul.f32 %v189, %v232
    %v237 = vmul.f32 %v193, %v228
    %v238 = vmul.f32 %v193, %v232
    %v239 = vmul.f32 %v197, %v228
    %v240 = vmul.f32 %v197, %v232
    %v241 = vmul.f32 %v201, %v228
    %v242 = vmul.f32 %v201, %v232
    %v243 = vmul.f32 %v205, %v228
    %v244 = vmul.f32 %v205, %v232
    %v245 = vmul.f32 %v209, %v228
    %v246 = vmul.f32 %v209, %v232
    %v247 = vmul.f32 %v213, %v228
    %v248 = vmul.f32 %v213, %v232
    %v249 = vadd.f32 %v167, %v233
    %v250 = vadd.f32 %v168, %v234
    %v251 = vadd.f32 %v169, %v235
    %v252 = vadd.f32 %v170, %v236
    %v253 = vadd.f32 %v171, %v237
    %v254 = vadd.f32 %v172, %v238
    %v255 = vadd.f32 %v173, %v239
    %v256 = vadd.f32 %v174, %v240
    %v257 = vadd.f32 %v175, %v241
    %v258 = vadd.f32 %v176, %v242
    %v259 = vadd.f32 %v177, %v243
    %v260 = vadd.f32 %v178, %v244
    %v261 = vadd.f32 %v179, %v245
    %v262 = vadd.f32 %v180, %v246
    %v263 = vadd.f32 %v181, %v247
    %v264 = vadd.f32 %v182, %v248
    %265 = vset.pattern.permute.xlu0 2
    %266 = vperm.xlu0 %265, %v36
    %v267 = vpop.permute.xlu0 %266
    %269 = vset.pattern.permute.xlu0 2
    %270 = vperm.xlu0 %269, %v37
    %v271 = vpop.permute.xlu0 %270
    %273 = vset.pattern.permute.xlu0 2
    %274 = vperm.xlu0 %273, %v38
    %v275 = vpop.permute.xlu0 %274
    %277 = vset.pattern.permute.xlu0 2
    %278 = vperm.xlu0 %277, %v39
    %v279 = vpop.permute.xlu0 %278
    %281 = vset.pattern.permute.xlu0 2
    %282 = vperm.xlu0 %281, %v40
    %v283 = vpop.permute.xlu0 %282
    %285 = vset.pattern.permute.xlu0 2
    %286 = vperm.xlu0 %285, %v41
    %v287 = vpop.permute.xlu0 %286
    %289 = vset.pattern.permute.xlu0 2
    %290 = vperm.xlu0 %289, %v42
    %v291 = vpop.permute.xlu0 %290
    %293 = vset.pattern.permute.xlu0 2
    %294 = vperm.xlu0 %293, %v43
    %v295 = vpop.permute.xlu0 %294
    %v297 = vlaneseq
    %v298 = vshrl.u32 %v297, 7
    %v299 = vsub.s32 2, %v298
    %v300 = vrot.slane %v35, %v299
    %v301 = vlaneseq
    %v302 = vshrl.u32 %v301, 7
    %v303 = vsub.s32 6, %v302
    %v304 = vrot.slane %v35, %v303
    %v307 = vlaneseq
    %v308 = vshrl.u32 %v307, 7
    %v309 = vsub.s32 2, %v308
    %v310 = vrot.slane %v300, %v309
    %v311 = vlaneseq
    %v312 = vshrl.u32 %v311, 7
    %v313 = vsub.s32 2, %v312
    %v314 = vrot.slane %v304, %v313
    %v315 = vmul.f32 %v267, %v310
    %v316 = vmul.f32 %v267, %v314
    %v317 = vmul.f32 %v271, %v310
    %v318 = vmul.f32 %v271, %v314
    %v319 = vmul.f32 %v275, %v310
    %v320 = vmul.f32 %v275, %v314
    %v321 = vmul.f32 %v279, %v310
    %v322 = vmul.f32 %v279, %v314
    %v323 = vmul.f32 %v283, %v310
    %v324 = vmul.f32 %v283, %v314
    %v325 = vmul.f32 %v287, %v310
    %v326 = vmul.f32 %v287, %v314
    %v327 = vmul.f32 %v291, %v310
    %v328 = vmul.f32 %v291, %v314
    %v329 = vmul.f32 %v295, %v310
    %v330 = vmul.f32 %v295, %v314
    %v331 = vadd.f32 %v249, %v315
    %v332 = vadd.f32 %v250, %v316
    %v333 = vadd.f32 %v251, %v317
    %v334 = vadd.f32 %v252, %v318
    %v335 = vadd.f32 %v253, %v319
    %v336 = vadd.f32 %v254, %v320
    %v337 = vadd.f32 %v255, %v321
    %v338 = vadd.f32 %v256, %v322
    %v339 = vadd.f32 %v257, %v323
    %v340 = vadd.f32 %v258, %v324
    %v341 = vadd.f32 %v259, %v325
    %v342 = vadd.f32 %v260, %v326
    %v343 = vadd.f32 %v261, %v327
    %v344 = vadd.f32 %v262, %v328
    %v345 = vadd.f32 %v263, %v329
    %v346 = vadd.f32 %v264, %v330
    %347 = vset.pattern.permute.xlu0 3
    %348 = vperm.xlu0 %347, %v36
    %v349 = vpop.permute.xlu0 %348
    %351 = vset.pattern.permute.xlu0 3
    %352 = vperm.xlu0 %351, %v37
    %v353 = vpop.permute.xlu0 %352
    %355 = vset.pattern.permute.xlu0 3
    %356 = vperm.xlu0 %355, %v38
    %v357 = vpop.permute.xlu0 %356
    %359 = vset.pattern.permute.xlu0 3
    %360 = vperm.xlu0 %359, %v39
    %v361 = vpop.permute.xlu0 %360
    %363 = vset.pattern.permute.xlu0 3
    %364 = vperm.xlu0 %363, %v40
    %v365 = vpop.permute.xlu0 %364
    %367 = vset.pattern.permute.xlu0 3
    %368 = vperm.xlu0 %367, %v41
    %v369 = vpop.permute.xlu0 %368
    %371 = vset.pattern.permute.xlu0 3
    %372 = vperm.xlu0 %371, %v42
    %v373 = vpop.permute.xlu0 %372
    %375 = vset.pattern.permute.xlu0 3
    %376 = vperm.xlu0 %375, %v43
    %v377 = vpop.permute.xlu0 %376
    %v379 = vlaneseq
    %v380 = vshrl.u32 %v379, 7
    %v381 = vsub.s32 3, %v380
    %v382 = vrot.slane %v35, %v381
    %v383 = vlaneseq
    %v384 = vshrl.u32 %v383, 7
    %v385 = vsub.s32 7, %v384
    %v386 = vrot.slane %v35, %v385
    %v389 = vlaneseq
    %v390 = vshrl.u32 %v389, 7
    %v391 = vsub.s32 3, %v390
    %v392 = vrot.slane %v382, %v391
    %v393 = vlaneseq
    %v394 = vshrl.u32 %v393, 7
    %v395 = vsub.s32 3, %v394
    %v396 = vrot.slane %v386, %v395
    %v397 = vmul.f32 %v349, %v392
    %v398 = vmul.f32 %v349, %v396
    %v399 = vmul.f32 %v353, %v392
    %v400 = vmul.f32 %v353, %v396
    %v401 = vmul.f32 %v357, %v392
    %v402 = vmul.f32 %v357, %v396
    %v403 = vmul.f32 %v361, %v392
    %v404 = vmul.f32 %v361, %v396
    %v405 = vmul.f32 %v365, %v392
    %v406 = vmul.f32 %v365, %v396
    %v407 = vmul.f32 %v369, %v392
    %v408 = vmul.f32 %v369, %v396
    %v409 = vmul.f32 %v373, %v392
    %v410 = vmul.f32 %v373, %v396
    %v411 = vmul.f32 %v377, %v392
    %v412 = vmul.f32 %v377, %v396
    %v413 = vadd.f32 %v331, %v397
    %v414 = vadd.f32 %v332, %v398
    %v415 = vadd.f32 %v333, %v399
    %v416 = vadd.f32 %v334, %v400
    %v417 = vadd.f32 %v335, %v401
    %v418 = vadd.f32 %v336, %v402
    %v419 = vadd.f32 %v337, %v403
    %v420 = vadd.f32 %v338, %v404
    %v421 = vadd.f32 %v339, %v405
    %v422 = vadd.f32 %v340, %v406
    %v423 = vadd.f32 %v341, %v407
    %v424 = vadd.f32 %v342, %v408
    %v425 = vadd.f32 %v343, %v409
    %v426 = vadd.f32 %v344, %v410
    %v427 = vadd.f32 %v345, %v411
    %v428 = vadd.f32 %v346, %v412
    %vm429 = vcmp.gt.f32.partialorder %v413, 0.0
    %vm430 = vcmp.gt.f32.partialorder %v414, 0.0
    %vm431 = vcmp.gt.f32.partialorder %v415, 0.0
    %vm432 = vcmp.gt.f32.partialorder %v416, 0.0
    %vm433 = vcmp.gt.f32.partialorder %v417, 0.0
    %vm434 = vcmp.gt.f32.partialorder %v418, 0.0
    %vm435 = vcmp.gt.f32.partialorder %v419, 0.0
    %vm436 = vcmp.gt.f32.partialorder %v420, 0.0
    %vm437 = vcmp.gt.f32.partialorder %v421, 0.0
    %vm438 = vcmp.gt.f32.partialorder %v422, 0.0
    %vm439 = vcmp.gt.f32.partialorder %v423, 0.0
    %vm440 = vcmp.gt.f32.partialorder %v424, 0.0
    %vm441 = vcmp.gt.f32.partialorder %v425, 0.0
    %vm442 = vcmp.gt.f32.partialorder %v426, 0.0
    %vm443 = vcmp.gt.f32.partialorder %v427, 0.0
    %vm444 = vcmp.gt.f32.partialorder %v428, 0.0
    %v445 = vmul.f32 %v413, 0.01
    %v446 = vmul.f32 %v414, 0.01
    %v447 = vmul.f32 %v415, 0.01
    %v448 = vmul.f32 %v416, 0.01
    %v449 = vmul.f32 %v417, 0.01
    %v450 = vmul.f32 %v418, 0.01
    %v451 = vmul.f32 %v419, 0.01
    %v452 = vmul.f32 %v420, 0.01
    %v453 = vmul.f32 %v421, 0.01
    %v454 = vmul.f32 %v422, 0.01
    %v455 = vmul.f32 %v423, 0.01
    %v456 = vmul.f32 %v424, 0.01
    %v457 = vmul.f32 %v425, 0.01
    %v458 = vmul.f32 %v426, 0.01
    %v459 = vmul.f32 %v427, 0.01
    %v460 = vmul.f32 %v428, 0.01
    %v461 = vsel %vm429, %v413, %v445
    %v462 = vsel %vm430, %v414, %v446
    %v463 = vsel %vm431, %v415, %v447
    %v464 = vsel %vm432, %v416, %v448
    %v465 = vsel %vm433, %v417, %v449
    %v466 = vsel %vm434, %v418, %v450
    %v467 = vsel %vm435, %v419, %v451
    %v468 = vsel %vm436, %v420, %v452
    %v469 = vsel %vm437, %v421, %v453
    %v470 = vsel %vm438, %v422, %v454
    %v471 = vsel %vm439, %v423, %v455
    %v472 = vsel %vm440, %v424, %v456
    %v473 = vsel %vm441, %v425, %v457
    %v474 = vsel %vm442, %v426, %v458
    %v475 = vsel %vm443, %v427, %v459
    %v476 = vsel %vm444, %v428, %v460
    %v477 = vld [vmem:[%s3] sm:$0xff]
    %v478 = vld [vmem:[%s3 + $0x8] sm:$0xff]
    %v479 = vld [vmem:[%s3 + $0x10] sm:$0xff]
    %v480 = vld [vmem:[%s3 + $0x18] sm:$0xff]
    %v481 = vld [vmem:[%s4] sm:$0xff]
    %v482 = vld [vmem:[%s4 + $0x8] sm:$0xff]
    %v483 = vld [vmem:[%s4 + $0x10] sm:$0xff]
    %v484 = vld [vmem:[%s4 + $0x18] sm:$0xff]
    %486 = vset.pattern.permute.xlu0 0
    %487 = vperm.xlu0 %486, %v481
    %v488 = vpop.permute.xlu0 %487
    %491 = vset.pattern.permute.xlu0 0
    %492 = vperm.xlu0 %491, %v482
    %v493 = vpop.permute.xlu0 %492
    %496 = vset.pattern.permute.xlu0 0
    %497 = vperm.xlu0 %496, %v483
    %v498 = vpop.permute.xlu0 %497
    %501 = vset.pattern.permute.xlu0 0
    %502 = vperm.xlu0 %501, %v484
    %v503 = vpop.permute.xlu0 %502
    %vm505 = vcmask 523264
    %v507 = vsel %vm505, %v477, 0
    %v510 = vsel %vm505, %v478, 0
    %v513 = vsel %vm505, %v479, 0
    %v516 = vsel %vm505, %v480, 0
    %518 = vmatprep.subr.mxu0 %v462
    %519 = vmatpush1.msra.mxu0 %v461
    %520 = vmatprep.subr.mxu0 %v464
    %521 = vmatpush1.msra.mxu0 %v463
    %522 = vmatprep.subr.mxu0 %v466
    %523 = vmatpush1.msra.mxu0 %v465
    %524 = vmatprep.subr.mxu0 %v468
    %525 = vmatpush1.msra.mxu0 %v467
    %526 = vmatprep.subr.mxu0 %v470
    %527 = vmatpush1.msra.mxu0 %v469
    %528 = vmatprep.subr.mxu0 %v472
    %529 = vmatpush1.msra.mxu0 %v471
    %530 = vmatprep.subr.mxu0 %v474
    %531 = vmatpush1.msra.mxu0 %v473
    %532 = vmatprep.subr.mxu0 %v476
    %533 = vmatpush1.msra.mxu0 %v475
    %534 = vmatprep.subr.mxu0 0.0
    %535 = vmatpush1.msra.mxu0 0.0
    %536 = vmatprep.subr.mxu0 0.0
    %537 = vmatpush1.msra.mxu0 0.0
    %538 = vmatprep.subr.mxu0 0.0
    %539 = vmatpush1.msra.mxu0 0.0
    %540 = vmatprep.subr.mxu0 0.0
    %541 = vmatpush1.msra.mxu0 0.0
    %542 = vmatprep.subr.mxu0 0.0
    %543 = vmatpush1.msra.mxu0 0.0
    %544 = vmatprep.subr.mxu0 0.0
    %545 = vmatpush1.msra.mxu0 0.0
    %546 = vmatprep.subr.mxu0 0.0
    %547 = vmatpush1.msra.mxu0 0.0
    %548 = vmatprep.subr.mxu0 0.0
    %549 = vmatpush1.msra.mxu0 0.0
    %550 = vmatprep.subr.mxu0 0.0
    %551 = vmatpush1.msra.mxu0 0.0
    %552 = vmatprep.subr.mxu0 0.0
    %553 = vmatpush1.msra.mxu0 0.0
    %554 = vmatprep.subr.mxu0 0.0
    %555 = vmatpush1.msra.mxu0 0.0
    %556 = vmatprep.subr.mxu0 0.0
    %557 = vmatpush1.msra.mxu0 0.0
    %558 = vmatprep.subr.mxu0 0.0
    %559 = vmatpush1.msra.mxu0 0.0
    %560 = vmatprep.subr.mxu0 0.0
    %561 = vmatpush1.msra.mxu0 0.0
    %562 = vmatprep.subr.mxu0 0.0
    %563 = vmatpush1.msra.mxu0 0.0
    %564 = vmatprep.subr.mxu0 0.0
    %565 = vmatpush1.msra.mxu0 0.0
    %566 = vmatprep.subr.mxu0 0.0
    %567 = vmatpush1.msra.mxu0 0.0
    %568 = vmatprep.subr.mxu0 0.0
    %569 = vmatpush1.msra.mxu0 0.0
    %570 = vmatprep.subr.mxu0 0.0
    %571 = vmatpush1.msra.mxu0 0.0
    %572 = vmatprep.subr.mxu0 0.0
    %573 = vmatpush1.msra.mxu0 0.0
    %574 = vmatprep.subr.mxu0 0.0
    %575 = vmatpush1.msra.mxu0 0.0
    %576 = vmatprep.subr.mxu0 0.0
    %577 = vmatpush1.msra.mxu0 0.0
    %578 = vmatprep.subr.mxu0 0.0
    %579 = vmatpush1.msra.mxu0 0.0
    %580 = vmatprep.subr.mxu0 0.0
    %581 = vmatpush1.msra.mxu0 0.0
    %582 = vmatprep.mubr.f32.mxu0 0.0
    %583 = vmatmul.mubr.f32.gmra.mrb[0].mxu0 %v507
    %v584 = vpop.f32.mrb[0].mxu0
    %v585 = vadd.f32 %v488, %v584
    %v586 = vpop.f32.mrb[0].mxu0
    %v587 = vadd.f32 %v488, %v586
    %588 = vmatprep.mubr.f32.mxu0 0.0
    %589 = vmatmul.mubr.f32.gmra.mrb[0].mxu0 %v510
    %v590 = vpop.f32.mrb[0].mxu0
    %v591 = vadd.f32 %v493, %v590
    %v592 = vpop.f32.mrb[0].mxu0
    %v593 = vadd.f32 %v493, %v592
    %594 = vmatprep.mubr.f32.mxu0 0.0
    %595 = vmatmul.mubr.f32.gmra.mrb[0].mxu0 %v513
    %v596 = vpop.f32.mrb[0].mxu0
    %v597 = vadd.f32 %v498, %v596
    %v598 = vpop.f32.mrb[0].mxu0
    %v599 = vadd.f32 %v498, %v598
    %600 = vmatprep.mubr.f32.mxu0 0.0
    %601 = vmatmul.mubr.f32.gmra.mrb[0].mxu0 %v516
    %v602 = vpop.f32.mrb[0].mxu0
    %v603 = vadd.f32 %v503, %v602
    %v604 = vpop.f32.mrb[0].mxu0
    %v605 = vadd.f32 %v503, %v604
    %606 = vdwg.mxu0
    %vm607 = vcmp.gt.f32.partialorder %v585, 0.0
    %vm608 = vcmp.gt.f32.partialorder %v587, 0.0
    %vm609 = vcmp.gt.f32.partialorder %v591, 0.0
    %vm610 = vcmp.gt.f32.partialorder %v593, 0.0
    %vm611 = vcmp.gt.f32.partialorder %v597, 0.0
    %vm612 = vcmp.gt.f32.partialorder %v599, 0.0
    %vm613 = vcmp.gt.f32.partialorder %v603, 0.0
    %vm614 = vcmp.gt.f32.partialorder %v605, 0.0
    %v615 = vmul.f32 %v585, 0.01
    %v616 = vmul.f32 %v587, 0.01
    %v617 = vmul.f32 %v591, 0.01
    %v618 = vmul.f32 %v593, 0.01
    %v619 = vmul.f32 %v597, 0.01
    %v620 = vmul.f32 %v599, 0.01
    %v621 = vmul.f32 %v603, 0.01
    %v622 = vmul.f32 %v605, 0.01
    %v623 = vsel %vm607, %v585, %v615
    %v624 = vsel %vm608, %v587, %v616
    %v625 = vsel %vm609, %v591, %v617
    %v626 = vsel %vm610, %v593, %v618
    %v627 = vsel %vm611, %v597, %v619
    %v628 = vsel %vm612, %v599, %v620
    %v629 = vsel %vm613, %v603, %v621
    %v630 = vsel %vm614, %v605, %v622
    %v631 = vld [vmem:[%s5] sm:$0xff]
    %v632 = vld [vmem:[%s5 + $0x8] sm:$0xff]
    %v633 = vld [vmem:[%s5 + $0x10] sm:$0xff]
    %v634 = vld [vmem:[%s5 + $0x18] sm:$0xff]
    %v635 = vld [vmem:[%s6] sm:$0xff]
    %v636 = vld [vmem:[%s6 + $0x8] sm:$0xff]
    %v637 = vld [vmem:[%s6 + $0x10] sm:$0xff]
    %v638 = vld [vmem:[%s6 + $0x18] sm:$0xff]
    %640 = vset.pattern.permute.xlu0 0
    %641 = vperm.xlu0 %640, %v635
    %v642 = vpop.permute.xlu0 %641
    %645 = vset.pattern.permute.xlu0 0
    %646 = vperm.xlu0 %645, %v636
    %v647 = vpop.permute.xlu0 %646
    %650 = vset.pattern.permute.xlu0 0
    %651 = vperm.xlu0 %650, %v637
    %v652 = vpop.permute.xlu0 %651
    %655 = vset.pattern.permute.xlu0 0
    %656 = vperm.xlu0 %655, %v638
    %v657 = vpop.permute.xlu0 %656
    %vm659 = vcmask 261120
    %v661 = vsel %vm659, %v631, 0
    %v664 = vsel %vm659, %v632, 0
    %v667 = vsel %vm659, %v633, 0
    %v670 = vsel %vm659, %v634, 0
    %672 = vmatprep.subr.mxu0 %v624
    %673 = vmatpush1.msra.mxu0 %v623
    %674 = vmatprep.subr.mxu0 %v626
    %675 = vmatpush1.msra.mxu0 %v625
    %676 = vmatprep.subr.mxu0 %v628
    %677 = vmatpush1.msra.mxu0 %v627
    %678 = vmatprep.subr.mxu0 %v630
    %679 = vmatpush1.msra.mxu0 %v629
    %680 = vmatprep.subr.mxu0 0.0
    %681 = vmatpush1.msra.mxu0 0.0
    %682 = vmatprep.subr.mxu0 0.0
    %683 = vmatpush1.msra.mxu0 0.0
    %684 = vmatprep.subr.mxu0 0.0
    %685 = vmatpush1.msra.mxu0 0.0
    %686 = vmatprep.subr.mxu0 0.0
    %687 = vmatpush1.msra.mxu0 0.0
    %688 = vmatprep.subr.mxu0 0.0
    %689 = vmatpush1.msra.mxu0 0.0
    %690 = vmatprep.subr.mxu0 0.0
    %691 = vmatpush1.msra.mxu0 0.0
    %692 = vmatprep.subr.mxu0 0.0
    %693 = vmatpush1.msra.mxu0 0.0
    %694 = vmatprep.subr.mxu0 0.0
    %695 = vmatpush1.msra.mxu0 0.0
    %696 = vmatprep.subr.mxu0 0.0
    %697 = vmatpush1.msra.mxu0 0.0
    %698 = vmatprep.subr.mxu0 0.0
    %699 = vmatpush1.msra.mxu0 0.0
    %700 = vmatprep.subr.mxu0 0.0
    %701 = vmatpush1.msra.mxu0 0.0
    %702 = vmatprep.subr.mxu0 0.0
    %703 = vmatpush1.msra.mxu0 0.0
    %704 = vmatprep.subr.mxu0 0.0
    %705 = vmatpush1.msra.mxu0 0.0
    %706 = vmatprep.subr.mxu0 0.0
    %707 = vmatpush1.msra.mxu0 0.0
    %708 = vmatprep.subr.mxu0 0.0
    %709 = vmatpush1.msra.mxu0 0.0
    %710 = vmatprep.subr.mxu0 0.0
    %711 = vmatpush1.msra.mxu0 0.0
    %712 = vmatprep.subr.mxu0 0.0
    %713 = vmatpush1.msra.mxu0 0.0
    %714 = vmatprep.subr.mxu0 0.0
    %715 = vmatpush1.msra.mxu0 0.0
    %716 = vmatprep.subr.mxu0 0.0
    %717 = vmatpush1.msra.mxu0 0.0
    %718 = vmatprep.subr.mxu0 0.0
    %719 = vmatpush1.msra.mxu0 0.0
    %720 = vmatprep.subr.mxu0 0.0
    %721 = vmatpush1.msra.mxu0 0.0
    %722 = vmatprep.subr.mxu0 0.0
    %723 = vmatpush1.msra.mxu0 0.0
    %724 = vmatprep.subr.mxu0 0.0
    %725 = vmatpush1.msra.mxu0 0.0
    %726 = vmatprep.subr.mxu0 0.0
    %727 = vmatpush1.msra.mxu0 0.0
    %728 = vmatprep.subr.mxu0 0.0
    %729 = vmatpush1.msra.mxu0 0.0
    %730 = vmatprep.subr.mxu0 0.0
    %731 = vmatpush1.msra.mxu0 0.0
    %732 = vmatprep.subr.mxu0 0.0
    %733 = vmatpush1.msra.mxu0 0.0
    %734 = vmatprep.subr.mxu0 0.0
    %735 = vmatpush1.msra.mxu0 0.0
    %736 = vmatprep.mubr.f32.mxu0 0.0
    %737 = vmatmul.mubr.f32.gmra.mrb[0].mxu0 %v661
    %v738 = vpop.f32.mrb[0].mxu0
    %v739 = vadd.f32 %v642, %v738
    %v740 = vpop.f32.mrb[0].mxu0
    %v741 = vadd.f32 %v642, %v740
    %742 = vmatprep.mubr.f32.mxu0 0.0
    %743 = vmatmul.mubr.f32.gmra.mrb[0].mxu0 %v664
    %v744 = vpop.f32.mrb[0].mxu0
    %v745 = vadd.f32 %v647, %v744
    %v746 = vpop.f32.mrb[0].mxu0
    %v747 = vadd.f32 %v647, %v746
    %748 = vmatprep.mubr.f32.mxu0 0.0
    %749 = vmatmul.mubr.f32.gmra.mrb[0].mxu0 %v667
    %v750 = vpop.f32.mrb[0].mxu0
    %v751 = vadd.f32 %v652, %v750
    %v752 = vpop.f32.mrb[0].mxu0
    %v753 = vadd.f32 %v652, %v752
    %754 = vmatprep.mubr.f32.mxu0 0.0
    %755 = vmatmul.mubr.f32.gmra.mrb[0].mxu0 %v670
    %v756 = vpop.f32.mrb[0].mxu0
    %v757 = vadd.f32 %v657, %v756
    %v758 = vpop.f32.mrb[0].mxu0
    %v759 = vadd.f32 %v657, %v758
    %760 = vdwg.mxu0
    %vm761 = vcmp.gt.f32.partialorder %v739, 0.0
    %vm762 = vcmp.gt.f32.partialorder %v741, 0.0
    %vm763 = vcmp.gt.f32.partialorder %v745, 0.0
    %vm764 = vcmp.gt.f32.partialorder %v747, 0.0
    %vm765 = vcmp.gt.f32.partialorder %v751, 0.0
    %vm766 = vcmp.gt.f32.partialorder %v753, 0.0
    %vm767 = vcmp.gt.f32.partialorder %v757, 0.0
    %vm768 = vcmp.gt.f32.partialorder %v759, 0.0
    %v769 = vmul.f32 %v739, 0.01
    %v770 = vmul.f32 %v741, 0.01
    %v771 = vmul.f32 %v745, 0.01
    %v772 = vmul.f32 %v747, 0.01
    %v773 = vmul.f32 %v751, 0.01
    %v774 = vmul.f32 %v753, 0.01
    %v775 = vmul.f32 %v757, 0.01
    %v776 = vmul.f32 %v759, 0.01
    %v777 = vsel %vm761, %v739, %v769
    %v778 = vsel %vm762, %v741, %v770
    %v779 = vsel %vm763, %v745, %v771
    %v780 = vsel %vm764, %v747, %v772
    %v781 = vsel %vm765, %v751, %v773
    %v782 = vsel %vm766, %v753, %v774
    %v783 = vsel %vm767, %v757, %v775
    %v784 = vsel %vm768, %v759, %v776
    %v785 = vld [vmem:[%s7] sm:$0xff]
    %v786 = vld [vmem:[%s7 + $0x8] sm:$0xff]
    %v787 = vld [vmem:[%s7 + $0x10] sm:$0xff]
    %v788 = vld [vmem:[%s7 + $0x18] sm:$0xff]
    %790 = vset.pattern.permute.xlu0 0
    %791 = vperm.xlu0 %790, %v785
    %v792 = vpop.permute.xlu0 %791
    %795 = vset.pattern.permute.xlu0 0
    %796 = vperm.xlu0 %795, %v786
    %v797 = vpop.permute.xlu0 %796
    %800 = vset.pattern.permute.xlu0 0
    %801 = vperm.xlu0 %800, %v787
    %v802 = vpop.permute.xlu0 %801
    %805 = vset.pattern.permute.xlu0 0
    %806 = vperm.xlu0 %805, %v788
    %v807 = vpop.permute.xlu0 %806
    %v809 = vmul.f32 %v777, %v792
    %v810 = vmul.f32 %v778, %v792
    %v811 = vmul.f32 %v779, %v797
    %v812 = vmul.f32 %v780, %v797
    %v813 = vmul.f32 %v781, %v802
    %v814 = vmul.f32 %v782, %v802
    %v815 = vmul.f32 %v783, %v807
    %v816 = vmul.f32 %v784, %v807
    %v817 = vadd.f32 %v809, %v811
    %v818 = vadd.f32 %v817, %v813
    %v819 = vadd.f32 %v818, %v815
    %v820 = vrot.slane %v819, 4
    %v821 = vadd.f32 %v819, %v820
    %v822 = vrot.slane %v821, 2
    %v823 = vadd.f32 %v821, %v822
    %v824 = vrot.slane %v823, 1
    %v825 = vadd.f32 %v823, %v824
    %v826 = vadd.f32 %v810, %v812
    %v827 = vadd.f32 %v826, %v814
    %v828 = vadd.f32 %v827, %v816
    %v829 = vrot.slane %v828, 4
    %v830 = vadd.f32 %v828, %v829
    %v831 = vrot.slane %v830, 2
    %v832 = vadd.f32 %v830, %v831
    %v833 = vrot.slane %v832, 1
    %v834 = vadd.f32 %v832, %v833
    %v835 = vld [vmem:[#allocation2] sm:$0x1]
    %837 = vset.pattern.permute.xlu0 0
    %838 = vperm.xlu0 %837, %v835
    %v839 = vpop.permute.xlu0 %838
    %v841 = vlaneseq
    %v842 = vshrl.u32 %v841, 7
    %v843 = vsub.s32 0, %v842
    %v844 = vrot.slane %v839, %v843
    %v845 = vadd.f32 %v825, %v844
    %v846 = vadd.f32 %v834, %v844
    %v849 = vcombine.low %v845, %v846
    %v851 = vunpack.c.l.s4 1966171168
    %v852 = vunpack.c.0.s8 %v851
    %v853 = vlaneseq
    %v854 = vshrl.u32 %v853, 7
    %v855 = vsub.s32 %v852, %v854
    %v856 = vrot.slane %v849, %v855
    %v858 = vunpack.c.l.s4 1966171168
    %v859 = vunpack.c.0.s8 %v858
    %v860 = vlaneseq
    %v861 = vshrl.u32 %v860, 7
    %v862 = vsub.s32 %v859, %v861
    %v863 = vrot.slane %v856, %v862
    %v865 = vlaneseq
    %vm866 = vcmp.ge.s32.totalorder %v865, 0
    %vm867 = vcmp.lt.s32.totalorder %v865, 256
    %vm868 = vmand %vm866, %vm867
    %869 = vst.msk [vmem:[#allocation3] sm:$0x3] %vm868, %v863
    // Predicated region
    $region38: #{target_value_nn.1} parent=1 // pred_check
      _
    $region39: #{target_value_nn.1} parent=1 // pred_check_branch
      %871 = sbr.rel (0) target = $region41
    $region40: #{target_value_nn.1} parent=1 // pred_region
      %s873 = ssub.s32 32, 32
      %874 = vsyncadd [#allocation4], %s873
      %s876 = sshll.u32 [#allocation3], 4
      %s877 = int_to_ptr.vmem [resolvable:$true] %s876
      %879 = dma.vmem_to_hbm [thread:$0]  %s877, 32, %s9, [#allocation4]
    $region41: #{target_value_nn.1} parent=1 // pred_fallthru
      _
    // Predicated region
    $region42: #{target_value_nn.1} parent=1 // pred_check
      _
    $region43: #{target_value_nn.1} parent=1 // pred_check_branch
      %881 = sbr.rel (0) target = $region45
    $region44: #{target_value_nn.1} parent=1 // pred_region
      %882 = dma.done [#allocation4], 32
    $region45: #{target_value_nn.1} parent=1 // pred_fallthru
      _
    %883 = vsyncpa [#allocation4], 1

</llo_original>
